<compile_context>
chip_gen: v7x
topology: tpu7x:2x2x1
jax: 0.10.0
libtpu: 0.0.40
codegen_flags: <defaults>
</compile_context>

<pallas_src>
import numpy as np
import jax
import jax.numpy as jnp
from jax.experimental import pallas as pl
from jax.experimental.pallas import tpu as pltpu


# ---------------------------------------------------------------------------
# Host-side sinusoid table (mirrors PositionEncoder.__init__ exactly)
# ---------------------------------------------------------------------------
def make_position_encoding(length, d_pos_vec, dtype=jnp.float32):
    pos = np.arange(length)[:, None].astype(np.float64)
    j = np.arange(d_pos_vec)[None, :]
    enc = pos / np.power(10000.0, 2.0 * (j // 2) / float(d_pos_vec))
    enc[:, 0::2] = np.sin(enc[:, 0::2])
    enc[:, 1::2] = np.cos(enc[:, 1::2])
    return jnp.asarray(enc, dtype=dtype)


# ---------------------------------------------------------------------------
# Pallas kernel: out = x + pos  (pos broadcast over the batch/row axis)
# ---------------------------------------------------------------------------
def _pos_add_kernel(x_ref, pos_ref, o_ref):
    # x_ref:   (TB, L*D)  block of flattened activations
    # pos_ref: (1,  L*D)  flattened position-encoding row (broadcast over rows)
    o_ref[...] = (x_ref[...] + pos_ref[...]).astype(o_ref.dtype)


def position_encoder(x, pos_enc):
    """Forward of PositionEncoder: x + pos_encoding.

    x:        (B, L, D) or (L, D)
    pos_enc:  (L, D)
    """
    squeeze_batch = x.ndim == 2
    if squeeze_batch:
        x = x[None]
    B, L, D = x.shape
    assert pos_enc.shape == (L, D)

    # Lane-dense layout: flatten (L, D) -> L*D on the lane axis (metadata-only
    # reshape for contiguous arrays).
    x2d = x.reshape(B, L * D)
    pos2d = pos_enc.reshape(1, L * D).astype(x.dtype)

    # Row tiling: keep the whole batch in one block while the per-block bytes
    # stay well under the scoped-VMEM budget (double-buffered in + out);
    # otherwise tile rows in multiples of 8 sublanes.
    bytes_per_row = L * D * jnp.dtype(x.dtype).itemsize
    vmem_budget = 8 << 20  # ~8 MiB per block -> comfortable with double-buffering
    if B * bytes_per_row <= vmem_budget:
        TB = B
    else:
        TB = max(8, (vmem_budget // bytes_per_row) // 8 * 8)
        TB = min(TB, B)
    nb = pl.cdiv(B, TB)

    out2d = pl.pallas_call(
        _pos_add_kernel,
        out_shape=jax.ShapeDtypeStruct((B, L * D), x.dtype),
        grid=(nb,),
        in_specs=[
            pl.BlockSpec((TB, L * D), lambda i: (i, 0)),
            pl.BlockSpec((1, L * D), lambda i: (0, 0)),
        ],
        out_specs=pl.BlockSpec((TB, L * D), lambda i: (i, 0)),
        compiler_params=pltpu.CompilerParams(
            dimension_semantics=("parallel",)),
    )(x2d, pos2d)

    out = out2d.reshape(B, L, D)
    return out[0] if squeeze_batch else out


# ---------------------------------------------------------------------------
if __name__ == "__main__":
    B, L, D = 2, 16, 32  # batch, sequence length, d_pos_vec (hidden)

    key = jax.random.PRNGKey(0)
    x = jax.random.normal(key, (B, L, D), jnp.float32)
    pos = make_position_encoding(L, D)

    fwd = jax.jit(lambda xx: position_encoder(xx, pos))
    out = fwd(x)
    jax.block_until_ready(out)

    # Reference: plain-JAX broadcast add (same semantics as the PyTorch module).
    ref = x + pos[None, :, :]

    assert out.shape == (B, L, D)
    assert bool(jnp.all(jnp.isfinite(out)))
    assert bool(jnp.allclose(out, ref, atol=1e-6, rtol=1e-6))
    print("KERNEL_OK")
</pallas_src>

<mosaic_0001>
module attributes {stable_mosaic.version = 11 : i64} {
  func.func @_pos_add_kernel(%arg0: i32, %arg1: memref<2x512xf32, #tpu.memory_space<vmem>>, %arg2: memref<1x512xf32, #tpu.memory_space<vmem>>, %arg3: memref<2x512xf32, #tpu.memory_space<vmem>>) attributes {dimension_semantics = [#tpu.dimension_semantics<parallel>], iteration_bounds = array<i64: 1>, scalar_prefetch = 0 : i64, scratch_operands = 0 : i64, tpu.core_type = #tpu.core_type<tc>, window_params = [{transform_indices = @transform_0, window_bounds = array<i64: 2, 512>}, {pipeline_mode = #tpu.pipeline_mode<synchronous>, transform_indices = @transform_1, window_bounds = array<i64: 1, 512>}, {transform_indices = @transform_2, window_bounds = array<i64: 2, 512>}]} {
    %c0 = arith.constant 0 : index
    %c0_0 = arith.constant 0 : index
    %0 = vector.load %arg1[%c0, %c0_0] : memref<2x512xf32, #tpu.memory_space<vmem>>, vector<2x512xf32>
    %c0_1 = arith.constant 0 : index
    %c0_2 = arith.constant 0 : index
    %1 = vector.load %arg2[%c0_1, %c0_2] : memref<1x512xf32, #tpu.memory_space<vmem>>, vector<1x512xf32>
    %2 = vector.broadcast %1 : vector<1x512xf32> to vector<2x512xf32>
    %3 = arith.addf %0, %2 : vector<2x512xf32>
    %c0_3 = arith.constant 0 : index
    %c0_4 = arith.constant 0 : index
    %4 = vector.load %arg3[%c0_3, %c0_4] : memref<2x512xf32, #tpu.memory_space<vmem>>, vector<2x512xf32>
    tpu.vector_store %arg3[%c0_3, %c0_4], %3 {strides = array<i32>} : memref<2x512xf32, #tpu.memory_space<vmem>>, vector<2x512xf32>,
    return
  }
  func.func @transform_0(%arg0: i32) -> (i32, i32) {
    %c0_i32 = arith.constant 0 : i32
    %c0_i32_0 = arith.constant 0 : i32
    return %arg0, %c0_i32 : i32, i32
  }
  func.func @transform_1(%arg0: i32) -> (i32, i32) {
    %c0_i32 = arith.constant 0 : i32
    %c0_i32_0 = arith.constant 0 : i32
    %c0_i32_1 = arith.constant 0 : i32
    return %c0_i32, %c0_i32_0 : i32, i32
  }
  func.func @transform_2(%arg0: i32) -> (i32, i32) {
    %c0_i32 = arith.constant 0 : i32
    %c0_i32_0 = arith.constant 0 : i32
    return %arg0, %c0_i32 : i32, i32
  }
}

</mosaic_0001>

<llo_original>
// kernel: _lambda_.1
$region0: #{_lambda_.1}
  #allocation0 [shape = 'u32[]', space=smem, size = 0x4, offset = 0x4, fixed_abs, tag = 'smem constant byte address 0x4 - core index']
  #allocation1 [shape = 'u32[144,128]{1,0:T(1,128)}', space=vmem, size = 0x12000, scoped, tag = 'internal scratch']
  %s0 = inlined_call_operand.vmem [shape: f32[2,512], index: 0, kind: input, shape index: {}]
  %s1 = inlined_call_operand.vmem [shape: f32[1,512], index: 1, kind: input, shape index: {}]
  %s2 = inlined_call_operand.vmem [shape: f32[2,512], index: 2, kind: output, shape index: {}]
  %s3 = sld [smem:[#allocation0]]
  $region18: #{_lambda_.1} parent=0
    _
  %s5 = ssub.s32 1, %s3
  %s6 = scalar_select 0, %s5, %s3
  // Predicated region
  $region2: #{_lambda_.1} parent=0 // pred_check
    _
  $region3: #{_lambda_.1} parent=0 // pred_check_branch
    %8 = sbr.rel (0) target = $region5
  $region4: #{_lambda_.1} parent=0 // pred_region
    _
  $region5: #{_lambda_.1} parent=0 // pred_fallthru
    _
  // Predicated region
  $region6: #{_lambda_.1} parent=0 // pred_check
    _
  $region7: #{_lambda_.1} parent=0 // pred_check_branch
    %10 = sbr.rel (0) target = $region9
  $region8: #{_lambda_.1} parent=0 // pred_region
    _
  $region9: #{_lambda_.1} parent=0 // pred_fallthru
    _
  %v11 = vld [vmem:[%s0] sm:$0xff]
  %v12 = vld [vmem:[%s1] sm:$0xf]
  %v14 = vlaneseq
  %v15 = vshrl.u32 %v14, 7
  %v16 = vsub.s32 0, %v15
  %v17 = vrot.slane %v12, %v16
  %v18 = vlaneseq
  %v19 = vshrl.u32 %v18, 7
  %v20 = vsub.s32 1, %v19
  %v21 = vrot.slane %v12, %v20
  %v22 = vlaneseq
  %v23 = vshrl.u32 %v22, 7
  %v24 = vsub.s32 2, %v23
  %v25 = vrot.slane %v12, %v24
  %v26 = vlaneseq
  %v27 = vshrl.u32 %v26, 7
  %v28 = vsub.s32 3, %v27
  %v29 = vrot.slane %v12, %v28
  %v30 = vcombine.low %v17, %v21
  %v31 = vcombine.low %v25, %v29
  %v33 = vunpack.c.l.s4 1983009808
  %v34 = vunpack.c.0.s8 %v33
  %v35 = vlaneseq
  %v36 = vshrl.u32 %v35, 7
  %v37 = vsub.s32 %v34, %v36
  %v38 = vrot.slane %v30, %v37
  %v40 = vunpack.c.l.s4 1983009808
  %v41 = vunpack.c.0.s8 %v40
  %v42 = vlaneseq
  %v43 = vshrl.u32 %v42, 7
  %v44 = vsub.s32 %v41, %v43
  %v45 = vrot.slane %v31, %v44
  %v46 = vcombine.low %v38, %v45
  %v48 = vadd.f32 %v11, %v46
  %49 = vst [vmem:[%s2] sm:$0xff] %v48
  // Predicated region
  $region10: #{_lambda_.1} parent=0 // pred_check
    _
  $region11: #{_lambda_.1} parent=0 // pred_check_branch
    %51 = sbr.rel (0) target = $region13
  $region12: #{_lambda_.1} parent=0 // pred_region
    _
  $region13: #{_lambda_.1} parent=0 // pred_fallthru
    _
  // Predicated region
  $region14: #{_lambda_.1} parent=0 // pred_check
    _
  $region15: #{_lambda_.1} parent=0 // pred_check_branch
    %53 = sbr.rel (0) target = $region17
  $region16: #{_lambda_.1} parent=0 // pred_region
    _
  $region17: #{_lambda_.1} parent=0 // pred_fallthru
    _

</llo_original>
